<compile_context>
chip_gen: v6e
topology: v6e:2x2x1
jax: 0.10.0
libtpu: 0.0.40
codegen_flags: <defaults>
</compile_context>

<pallas_src>
import math
from functools import partial

import jax
import jax.numpy as jnp
from jax.experimental import pallas as pl
from jax.experimental.pallas import tpu as pltpu

_LANE = 128
_SINGLE_BLOCK_ROWS = 1024                   # <= 512 KiB -> single full-extent block
_MAX_BLOCK_ROWS = 4096                      # (4096, 128) f32 block = 2 MiB
_PER_CHANNEL_BLOCK_BYTES = 2 * 1024 * 1024  # per-channel block budget (2 MiB)


def _round_up(x, m):
    return ((x + m - 1) // m) * m


# --------------------------- Pallas kernels ---------------------------------

def _abs_sum_kernel(valid_rows, block_rows, need_mask, x_ref, acc_ref):
    """Accumulate per-lane partial sums of |x| into a resident (1,128) output."""
    i = pl.program_id(0)

    @pl.when(i == 0)
    def _():
        acc_ref[...] = jnp.zeros_like(acc_ref)

    x = jnp.abs(x_ref[...].astype(jnp.float32))
    if need_mask:
        # Only the final (partial) block needs the row mask; full blocks take the
        # cheap path (no iota / where -> lower VPU pressure).
        last = pl.num_programs(0) - 1

        @pl.when(i == last)
        def _():
            row = i * block_rows + jax.lax.broadcasted_iota(jnp.int32, x.shape, 0)
            acc_ref[...] += jnp.sum(jnp.where(row < valid_rows, x, 0.0),
                                    axis=0, keepdims=True)

        @pl.when(i != last)
        def _():
            acc_ref[...] += jnp.sum(x, axis=0, keepdims=True)
    else:
        acc_ref[...] += jnp.sum(x, axis=0, keepdims=True)


def _quant_pertensor_kernel(min_q, max_q, scale_ref, x_ref, out_ref):
    s = scale_ref[0, 0]                 # scalar scale in SMEM
    inv_s = scale_ref[0, 1]             # precomputed 1/scale (hoisted to the wrapper)
    y = jnp.round(x_ref[...].astype(jnp.float32) * inv_s)
    out_ref[...] = (jnp.clip(y, min_q, max_q) * s).astype(out_ref.dtype)


def _abs_rowsum_kernel(valid_cols, block_cols, need_mask, x_ref, acc_ref):
    """Accumulate per-channel sum(|x|) into a resident (C,1) output."""
    j = pl.program_id(0)

    @pl.when(j == 0)
    def _():
        acc_ref[...] = jnp.zeros_like(acc_ref)

    x = jnp.abs(x_ref[...].astype(jnp.float32))
    if need_mask:
        last = pl.num_programs(0) - 1

        @pl.when(j == last)
        def _():
            col = j * block_cols + jax.lax.broadcasted_iota(jnp.int32, x.shape, 1)
            acc_ref[...] += jnp.sum(jnp.where(col < valid_cols, x, 0.0),
                                    axis=1, keepdims=True)

        @pl.when(j != last)
        def _():
            acc_ref[...] += jnp.sum(x, axis=1, keepdims=True)
    else:
        acc_ref[...] += jnp.sum(x, axis=1, keepdims=True)


def _quant_perchannel_kernel(min_q, max_q, s_ref, inv_ref, x_ref, out_ref):
    y = jnp.round(x_ref[...].astype(jnp.float32) * inv_ref[...])   # (C,1) broadcast
    out_ref[...] = (jnp.clip(y, min_q, max_q) * s_ref[...]).astype(out_ref.dtype)


# --------------------------- tiling helpers ----------------------------------

def _flatten_lanes(x):
    """Flatten to (rows, 128). Pads with zeros only when numel % 128 != 0."""
    flat = x.reshape(-1)
    n = flat.shape[0]
    rows = pl.cdiv(n, _LANE)
    pad = rows * _LANE - n
    if pad:
        # TODO(synk): eliminate this pad + the matching output un-pad slice by running
        # the per-tensor kernels over the flat 1-D array with 1-D blocks (masked partial
        # final block); kept the proven 2-D lane-dense path here for compile safety.
        flat = jnp.pad(flat, (0, pad))
    return flat.reshape(rows, _LANE), pad


def _choose_block_rows(rows):
    # Small tensors: one full-extent block (exempt from the (8,128) rule).
    if rows <= _SINGLE_BLOCK_ROWS:
        return rows
    # Cap at 2 MiB (in+out double-buffered = 8 MiB, safe under v5e's 16 MiB default
    # scoped VMEM) and aim for >= 4 grid steps so v7x can shard the "parallel" axis
    # across both TensorCores; v6e could take 4 MiB blocks but the marginal roofline
    # gain (~1%) isn't worth diverging per generation here.
    return min(_MAX_BLOCK_ROWS, _round_up(pl.cdiv(rows, 4), 8))


def _choose_block_cols(c, m):
    if m <= 1024:
        return m                      # tiny weights: single full-extent block
    per_row = max(_LANE, ((_PER_CHANNEL_BLOCK_BYTES // max(4 * c, 1)) // _LANE) * _LANE)
    quarter = _round_up(pl.cdiv(m, 4), _LANE)   # >= 4 grid steps for v7x megacore
    return max(_LANE, min(per_row, quarter))


# --------------------------- pallas_call wrappers ----------------------------

def _abs_sum_pallas(x2d):
    rows = x2d.shape[0]
    block_rows = _choose_block_rows(rows)
    grid = pl.cdiv(rows, block_rows)
    need_mask = (rows % block_rows) != 0
    # TODO(synk): on v7x a leading size-2 core-parallel axis (with a (2,128) accumulator)
    # would split this reduction across both TensorCores; kept single-core since it
    # only runs once per quantizer at init.
    partial_sums = pl.pallas_call(
        partial(_abs_sum_kernel, rows, block_rows, need_mask),
        out_shape=jax.ShapeDtypeStruct((1, _LANE), jnp.float32),
        grid=(grid,),
        in_specs=[pl.BlockSpec((block_rows, _LANE), lambda i: (i, 0))],
        out_specs=pl.BlockSpec((1, _LANE), lambda i: (0, 0)),
        compiler_params=pltpu.CompilerParams(
            dimension_semantics=("arbitrary",)),
    )(x2d)
    return jnp.sum(partial_sums)


def _quant_pertensor_pallas(x2d, scale_smem, min_q, max_q, out_dtype):
    rows = x2d.shape[0]
    block_rows = _choose_block_rows(rows)
    grid = pl.cdiv(rows, block_rows)
    return pl.pallas_call(
        partial(_quant_pertensor_kernel, min_q, max_q),
        out_shape=jax.ShapeDtypeStruct(x2d.shape, out_dtype),
        grid=(grid,),
        in_specs=[
            pl.BlockSpec(memory_space=pltpu.MemorySpace.SMEM),   # [scale, 1/scale]
            pl.BlockSpec((block_rows, _LANE), lambda i: (i, 0)),
        ],
        out_specs=pl.BlockSpec((block_rows, _LANE), lambda i: (i, 0)),
        compiler_params=pltpu.CompilerParams(
            dimension_semantics=("parallel",)),
    )(scale_smem, x2d)


def _abs_rowsum_pallas(x2d):
    C, M = x2d.shape
    block_cols = _choose_block_cols(C, M)
    grid = pl.cdiv(M, block_cols)
    need_mask = (M % block_cols) != 0
    out = pl.pallas_call(
        partial(_abs_rowsum_kernel, M, block_cols, need_mask),
        out_shape=jax.ShapeDtypeStruct((C, 1), jnp.float32),
        grid=(grid,),
        in_specs=[pl.BlockSpec((C, block_cols), lambda j: (0, j))],
        out_specs=pl.BlockSpec((C, 1), lambda j: (0, 0)),
        compiler_params=pltpu.CompilerParams(
            dimension_semantics=("arbitrary",)),
    )(x2d)
    return out[:, 0]


def _quant_perchannel_pallas(x2d, s_col, inv_col, min_q, max_q, out_dtype):
    C, M = x2d.shape
    block_cols = _choose_block_cols(C, M)
    grid = pl.cdiv(M, block_cols)
    return pl.pallas_call(
        partial(_quant_perchannel_kernel, min_q, max_q),
        out_shape=jax.ShapeDtypeStruct((C, M), out_dtype),
        grid=(grid,),
        in_specs=[
            pl.BlockSpec((C, 1), lambda j: (0, 0)),              # scale   (C,1)
            pl.BlockSpec((C, 1), lambda j: (0, 0)),              # 1/scale (C,1)
            pl.BlockSpec((C, block_cols), lambda j: (0, j)),
        ],
        out_specs=pl.BlockSpec((C, block_cols), lambda j: (0, j)),
        compiler_params=pltpu.CompilerParams(
            dimension_semantics=("parallel",)),
    )(s_col, inv_col, x2d)


# --------------------------- jitted forwards ---------------------------------

@partial(jax.jit, static_argnames=("min_q", "max_q", "eps", "init"))
def _lsq_forward_pertensor(inp, scale, *, min_q, max_q, eps, init):
    numel = inp.size
    x2d, pad = _flatten_lanes(inp)
    if init:
        abs_mean = _abs_sum_pallas(x2d) / numel
        scale = jnp.reshape((2.0 / math.sqrt(max_q)) * abs_mean, (1,))
    scale = jnp.maximum(scale.astype(jnp.float32), eps)   # clamp BEFORE reciprocal
    s = scale[0]
    scale_smem = jnp.stack([s, 1.0 / s]).reshape(1, 2)     # [scale, 1/scale] for SMEM
    out2d = _quant_pertensor_pallas(x2d, scale_smem, min_q, max_q, inp.dtype)
    if pad:
        out = out2d.reshape(-1)[:numel].reshape(inp.shape)
    else:
        out = out2d.reshape(inp.shape)
    return out, scale


@partial(jax.jit, static_argnames=("min_q", "max_q", "eps", "init"))
def _lsq_forward_perchannel(inp, scale, *, min_q, max_q, eps, init):
    C = inp.shape[0]
    x2d = inp.reshape(C, -1)
    if init:
        abs_mean = _abs_rowsum_pallas(x2d) / x2d.shape[1]
        scale = (2.0 / math.sqrt(max_q)) * abs_mean
    scale = jnp.maximum(scale.astype(jnp.float32), eps)    # clamp BEFORE reciprocal
    s_col = scale[:C].reshape(C, 1)
    inv_col = 1.0 / s_col
    out2d = _quant_perchannel_pallas(x2d, s_col, inv_col, min_q, max_q, inp.dtype)
    return out2d.reshape(inp.shape), scale


# --------------------------- Module port -------------------------------------

class LSQQuantizer:
    """JAX/Pallas port of mmdet_custom LSQQuantizer (forward pass)."""

    def __init__(self, quant_bit, scale_num=1, quant_on_weight=False,
                 check_inputs=False):
        assert scale_num == 1 or quant_on_weight, (
            'Channel_wise only can be used on weight quantization.')
        self.quant_bit = quant_bit
        self.scale_num = scale_num
        self.quant_on_weight = quant_on_weight
        if quant_on_weight:
            self.min_q = -1 * 2 ** (quant_bit - 1)
            self.max_q = 2 ** (quant_bit - 1) - 1
        else:
            self.min_q = 0
            self.max_q = 2 ** quant_bit - 1
        # deterministic init, same as nn.Parameter(torch.ones(scale_num))
        self.scale = jnp.ones((scale_num,), jnp.float32)
        self.init_state = False      # host-side bool: no device->host sync per call
        self.eps = 1e-6
        self.training = True
        # Debug-only non-negativity check for activations (torch asserts inp.min()>=0);
        # disabled by default because it costs a full extra HBM pass + host sync.
        self.check_inputs = check_inputs

    def __call__(self, inp):
        if self.check_inputs and not self.quant_on_weight:
            assert float(jnp.min(inp)) >= 0

        do_init = bool(self.training and not self.init_state)
        if do_init:
            self.init_state = True
            if self.scale_num != 1:
                assert self.quant_on_weight
                assert inp.shape[0] == self.scale_num

        # g = 1/sqrt(numel*max_q) only rescales the gradient; grad_scale / round_pass
        # are straight-through estimators whose forward value is the identity.
        if self.scale_num == 1:
            out, scale = _lsq_forward_pertensor(
                inp, self.scale, min_q=float(self.min_q), max_q=float(self.max_q),
                eps=self.eps, init=do_init)
        else:
            out, scale = _lsq_forward_perchannel(
                inp, self.scale, min_q=float(self.min_q), max_q=float(self.max_q),
                eps=self.eps, init=do_init)
        # torch does self.scale.data.clamp_(eps) in-place -> the stored parameter is
        # the clamped value; mirror that here.
        self.scale = scale
        return out


# --------------------------- reference & test --------------------------------

def _ref_scale(inp, quant_bit, scale_num, quant_on_weight, eps=1e-6):
    if quant_on_weight:
        min_q, max_q = -2 ** (quant_bit - 1), 2 ** (quant_bit - 1) - 1
    else:
        min_q, max_q = 0, 2 ** quant_bit - 1
    if scale_num == 1:
        abs_mean = jnp.mean(jnp.abs(inp))
        scale = jnp.reshape(2.0 * abs_mean / math.sqrt(max_q), (1,))
    else:
        abs_mean = jnp.mean(jnp.abs(inp).reshape(inp.shape[0], -1), axis=1)
        scale = 2.0 * abs_mean / math.sqrt(max_q)
    return min_q, max_q, jnp.maximum(scale, eps)


def _quant_ref(inp, scale, min_q, max_q, scale_num):
    """Plain-jnp re-quantization using the kernel's own scale."""
    if scale_num == 1:
        cur = scale[0]
    else:
        cur = scale.reshape((inp.shape[0],) + (1,) * (inp.ndim - 1))
    out = jnp.clip(jnp.round(inp / cur), min_q, max_q) * cur
    return out.astype(inp.dtype), cur


def _assert_quant_close(out, ref, step, max_flip_frac=0.005):
    # `ref` uses the kernel's own scale, so the only possible discrepancy is a pre-round
    # quotient sitting within ~1 ulp of a .5 boundary (kernel multiplies by an exact
    # reciprocal, the reference divides) -> a shift of exactly one quantization step.
    out = out.astype(jnp.float32)
    ref = ref.astype(jnp.float32)
    step = jnp.asarray(step, jnp.float32)
    diff = jnp.abs(out - ref)
    tight = diff <= 1e-6 + 1e-6 * jnp.abs(ref)
    flip = jnp.abs(diff - step) <= 1e-5 * (1.0 + step)
    assert bool(jnp.all(tight | flip)), float(jnp.max(diff))
    assert float(jnp.mean((~tight).astype(jnp.float32))) <= max_flip_frac


def _run_case(x, quant_bit, scale_num, quant_on_weight):
    q = LSQQuantizer(quant_bit=quant_bit, scale_num=scale_num,
                     quant_on_weight=quant_on_weight)
    out = jax.block_until_ready(q(x))
    assert out.shape == x.shape and out.dtype == x.dtype

    min_q, max_q, ref_scale = _ref_scale(x, quant_bit, scale_num, quant_on_weight)
    # Scale check: the kernel's abs-mean uses a different (per-lane) fp32 reduction
    # order than XLA's reduce, so allow realistic fp32 reduction-order noise.
    assert jnp.allclose(q.scale, ref_scale, rtol=5e-5, atol=1e-7), (
        q.scale, ref_scale)
    # Output check against a reference built from the kernel's own scale (near-exact).
    ref_out, step = _quant_ref(x, q.scale, min_q, max_q, scale_num)
    _assert_quant_close(out, ref_out, step)

    # Steady-state (init already done) path must reproduce the same output.
    out2 = jax.block_until_ready(q(x))
    assert bool(jnp.array_equal(out2, out))
    return q


if __name__ == "__main__":
    key = jax.random.PRNGKey(0)
    ks = jax.random.split(key, 6)

    # 1) Activation quantizer: per-tensor, 8-bit, non-negative NCHW, aligned numel,
    #    single-block grid.
    _run_case(jnp.abs(jax.random.normal(ks[0], (2, 4, 16, 16), jnp.float32)),
              quant_bit=8, scale_num=1, quant_on_weight=False)

    # 2) Weight quantizer: per-channel, 4-bit, tiny (C_out, C_in, kH, kW).
    _run_case(jax.random.normal(ks[1], (8, 4, 3, 3), jnp.float32),
              quant_bit=4, scale_num=8, quant_on_weight=True)

    # 3) Larger aligned activation: multi-block "parallel" grid, unmasked fast path.
    _run_case(jnp.abs(jax.random.normal(ks[2], (2, 8, 96, 192), jnp.float32)),
              quant_bit=8, scale_num=1, quant_on_weight=False)

    # 4) Activation whose numel is not a multiple of 128: pad/un-pad path, single block.
    _run_case(jnp.abs(jax.random.normal(ks[3], (2, 3, 15, 15), jnp.float32)),
              quant_bit=8, scale_num=1, quant_on_weight=False)

    # 5) Ragged numel + multi-block grid with a masked partial final block.
    _run_case(jnp.abs(jax.random.normal(ks[4], (2, 4, 127, 131), jnp.float32)),
              quant_bit=8, scale_num=1, quant_on_weight=False)

    # 6) Per-channel weight with a multi-block column grid + masked partial block.
    _run_case(jax.random.normal(ks[5], (8, 40, 7, 7), jnp.float32),
              quant_bit=4, scale_num=8, quant_on_weight=True)

    print("KERNEL_OK")
</pallas_src>

<mosaic_0001>
module attributes {stable_mosaic.version = 11 : i64} {
  func.func @_abs_sum_kernel(%arg0: i32, %arg1: memref<16x128xf32, #tpu.memory_space<vmem>>, %arg2: memref<1x128xf32, #tpu.memory_space<vmem>>) attributes {dimension_semantics = [#tpu.dimension_semantics<arbitrary>], iteration_bounds = array<i64: 1>, scalar_prefetch = 0 : i64, scratch_operands = 0 : i64, tpu.core_type = #tpu.core_type<tc>, window_params = [{transform_indices = @transform_0, window_bounds = array<i64: 16, 128>}, {pipeline_mode = #tpu.pipeline_mode<synchronous>, transform_indices = @transform_1, window_bounds = array<i64: 1, 128>}]} {
    %c0_i32 = arith.constant 0 : i32
    %0 = arith.cmpi eq, %arg0, %c0_i32 : i32
    %1 = arith.extui %0 : i1 to i32
    %c0_i32_0 = arith.constant 0 : i32
    %2 = arith.cmpi ne, %1, %c0_i32_0 : i32
    scf.if %2 {
      %cst_6 = arith.constant 0.000000e+00 : f32
      %10 = vector.broadcast %cst_6 : f32 to vector<1x128xf32>
      %c0_7 = arith.constant 0 : index
      %c0_8 = arith.constant 0 : index
      %11 = vector.load %arg2[%c0_7, %c0_8] : memref<1x128xf32, #tpu.memory_space<vmem>>, vector<1x128xf32>
      tpu.vector_store %arg2[%c0_7, %c0_8], %10 {strides = array<i32>} : memref<1x128xf32, #tpu.memory_space<vmem>>, vector<1x128xf32>,
    } else {
    }
    %c0 = arith.constant 0 : index
    %c0_1 = arith.constant 0 : index
    %3 = vector.load %arg1[%c0, %c0_1] : memref<16x128xf32, #tpu.memory_space<vmem>>, vector<16x128xf32>
    %4 = math.absf %3 : vector<16x128xf32>
    %c0_2 = arith.constant 0 : index
    %c0_3 = arith.constant 0 : index
    %5 = vector.load %arg2[%c0_2, %c0_3] : memref<1x128xf32, #tpu.memory_space<vmem>>, vector<1x128xf32>
    %cst = arith.constant dense<0.000000e+00> : vector<128xf32>
    %6 = vector.multi_reduction <add>, %4, %cst [0] : vector<16x128xf32> to vector<128xf32>
    %7 = vector.shape_cast %6 : vector<128xf32> to vector<1x128xf32>
    %8 = arith.addf %5, %7 : vector<1x128xf32>
    %c0_4 = arith.constant 0 : index
    %c0_5 = arith.constant 0 : index
    %9 = vector.load %arg2[%c0_4, %c0_5] : memref<1x128xf32, #tpu.memory_space<vmem>>, vector<1x128xf32>
    tpu.vector_store %arg2[%c0_4, %c0_5], %8 {strides = array<i32>} : memref<1x128xf32, #tpu.memory_space<vmem>>, vector<1x128xf32>,
    return
  }
  func.func @transform_0(%arg0: i32) -> (i32, i32) {
    %c0_i32 = arith.constant 0 : i32
    %c0_i32_0 = arith.constant 0 : i32
    return %arg0, %c0_i32 : i32, i32
  }
  func.func @transform_1(%arg0: i32) -> (i32, i32) {
    %c0_i32 = arith.constant 0 : i32
    %c0_i32_0 = arith.constant 0 : i32
    %c0_i32_1 = arith.constant 0 : i32
    return %c0_i32, %c0_i32_0 : i32, i32
  }
}

module attributes {stable_mosaic.version = 11 : i64} {
  func.func @_quant_pertensor_kernel(%arg0: i32, %arg1: memref<1x2xf32, #tpu.memory_space<smem>>, %arg2: memref<16x128xf32, #tpu.memory_space<vmem>>, %arg3: memref<16x128xf32, #tpu.memory_space<vmem>>) attributes {dimension_semantics = [#tpu.dimension_semantics<parallel>], iteration_bounds = array<i64: 1>, scalar_prefetch = 0 : i64, scratch_operands = 0 : i64, tpu.core_type = #tpu.core_type<tc>, window_params = [{transform_indices = @transform_0, window_bounds = array<i64: 1, 2>}, {transform_indices = @transform_1, window_bounds = array<i64: 16, 128>}, {transform_indices = @transform_2, window_bounds = array<i64: 16, 128>}]} {
    %c0 = arith.constant 0 : index
    %c0_0 = arith.constant 0 : index
    %0 = memref.load %arg1[%c0, %c0_0] : memref<1x2xf32, #tpu.memory_space<smem>>
    %c0_1 = arith.constant 0 : index
    %c1 = arith.constant 1 : index
    %1 = memref.load %arg1[%c0_1, %c1] : memref<1x2xf32, #tpu.memory_space<smem>>
    %c0_2 = arith.constant 0 : index
    %c0_3 = arith.constant 0 : index
    %2 = vector.load %arg2[%c0_2, %c0_3] : memref<16x128xf32, #tpu.memory_space<vmem>>, vector<16x128xf32>
    %3 = vector.broadcast %1 : f32 to vector<16x128xf32>
    %4 = arith.mulf %2, %3 : vector<16x128xf32>
    %5 = math.roundeven %4 : vector<16x128xf32>
    %cst = arith.constant 0.000000e+00 : f32
    %cst_4 = arith.constant 2.550000e+02 : f32
    %6 = vector.broadcast %cst : f32 to vector<16x128xf32>
    %7 = arith.maximumf %6, %5 : vector<16x128xf32>
    %8 = vector.broadcast %cst_4 : f32 to vector<16x128xf32>
    %9 = arith.minimumf %8, %7 : vector<16x128xf32>
    %10 = vector.broadcast %0 : f32 to vector<16x128xf32>
    %11 = arith.mulf %9, %10 : vector<16x128xf32>
    %c0_5 = arith.constant 0 : index
    %c0_6 = arith.constant 0 : index
    %12 = vector.load %arg3[%c0_5, %c0_6] : memref<16x128xf32, #tpu.memory_space<vmem>>, vector<16x128xf32>
    tpu.vector_store %arg3[%c0_5, %c0_6], %11 {strides = array<i32>} : memref<16x128xf32, #tpu.memory_space<vmem>>, vector<16x128xf32>,
    return
  }
  func.func @transform_0(%arg0: i32) -> (i32, i32) {
    %c0_i32 = arith.constant 0 : i32
    %c0_i32_0 = arith.constant 0 : i32
    %c0_i32_1 = arith.constant 0 : i32
    return %c0_i32, %c0_i32_0 : i32, i32
  }
  func.func @transform_1(%arg0: i32) -> (i32, i32) {
    %c0_i32 = arith.constant 0 : i32
    %c0_i32_0 = arith.constant 0 : i32
    return %arg0, %c0_i32 : i32, i32
  }
  func.func @transform_2(%arg0: i32) -> (i32, i32) {
    %c0_i32 = arith.constant 0 : i32
    %c0_i32_0 = arith.constant 0 : i32
    return %arg0, %c0_i32 : i32, i32
  }
}

</mosaic_0001>

<llo_original>
// kernel: _lsq_forward_pertensor.3
$region0: #{_lsq_forward_pertensor.3}
  #allocation0 [shape = 'u32[]', space=smem, size = 0x4, offset = 0x4, fixed_abs, tag = 'smem constant byte address 0x4 - core index']
  #allocation1 [shape = 'u32[144,128]{1,0:T(1,128)}', space=vmem, size = 0x12000, scoped, tag = 'internal scratch']
  %s0 = inlined_call_operand.vmem [shape: f32[1,2], index: 0, kind: input, shape index: {}]
  %s1 = inlined_call_operand.vmem [shape: f32[16,128], index: 1, kind: input, shape index: {}]
  %s2 = inlined_call_operand.vmem [shape: f32[16,128], index: 2, kind: output, shape index: {}]
  %s3 = sld [smem:[#allocation0]]
  $region22: #{_lsq_forward_pertensor.3} parent=0
    _
  %s5 = ssub.s32 1, %s3
  %s6 = scalar_select 0, %s5, %s3
  $region1: #{_lsq_forward_pertensor.3} parent=0
    #allocation2 [shape = 'u8[512]{0}', space=smem, size = 0x200, scoped, tag = 'input window, operand 0, single buffered']
    #allocation3 [shape = 's32[1]{0}', space=sflag, size = 0x4, scoped, tag = 'scoped memory for _lsq_forward_pertensor.3']
    %7 = vsyncpa [#allocation3], 0
    // Predicated region
    $region2: #{_lsq_forward_pertensor.3} parent=1 // pred_check
      _
    $region3: #{_lsq_forward_pertensor.3} parent=1 // pred_check_branch
      %9 = sbr.rel (0) target = $region5
    $region4: #{_lsq_forward_pertensor.3} parent=1 // pred_region
      %s11 = ssub.s32 16, 16
      %12 = vsyncadd [#allocation3], %s11
      %s14 = sshll.u32 %s0, 4
      %s15 = int_to_ptr.vmem [resolvable:$true] %s14
      %17 = dma.vmem_to_smem %s15, 16, [#allocation2], [#allocation3]
    $region5: #{_lsq_forward_pertensor.3} parent=1 // pred_fallthru
      _
    // Predicated region
    $region6: #{_lsq_forward_pertensor.3} parent=1 // pred_check
      _
    $region7: #{_lsq_forward_pertensor.3} parent=1 // pred_check_branch
      %19 = sbr.rel (0) target = $region9
    $region8: #{_lsq_forward_pertensor.3} parent=1 // pred_region
      _
    $region9: #{_lsq_forward_pertensor.3} parent=1 // pred_fallthru
      _
    // Predicated region
    $region10: #{_lsq_forward_pertensor.3} parent=1 // pred_check
      _
    $region11: #{_lsq_forward_pertensor.3} parent=1 // pred_check_branch
      %21 = sbr.rel (0) target = $region13
    $region12: #{_lsq_forward_pertensor.3} parent=1 // pred_region
      %22 = dma.done [#allocation3], 16
    $region13: #{_lsq_forward_pertensor.3} parent=1 // pred_fallthru
      _
    %23 = sfence
    %s24 = sld [smem:[#allocation2]]
    %s25 = sld [smem:[#allocation2 + $0x1]]
    %v26 = vld [vmem:[%s1] sm:$0xff]
    %v27 = vld [vmem:[%s1 + $0x8] sm:$0xff]
    %v28 = vstv %s25
    %v29 = vmul.f32 %v26, %v28
    %v30 = vmul.f32 %v27, %v28
    %v31 = vround.ne.pseudo %v29
    %v32 = vround.ne.pseudo %v30
    %v33 = vmax.f32 %v31, 0.0
    %v34 = vmax.f32 %v32, 0.0
    %v35 = vmin.f32 %v33, 255.0
    %v36 = vmin.f32 %v34, 255.0
    %v37 = vstv %s24
    %v38 = vmul.f32 %v35, %v37
    %v39 = vmul.f32 %v36, %v37
    %40 = vst [vmem:[%s2] sm:$0xff] %v38
    %41 = vst [vmem:[%s2 + $0x8] sm:$0xff] %v39
    // Predicated region
    $region14: #{_lsq_forward_pertensor.3} parent=1 // pred_check
      _
    $region15: #{_lsq_forward_pertensor.3} parent=1 // pred_check_branch
      %43 = sbr.rel (0) target = $region17
    $region16: #{_lsq_forward_pertensor.3} parent=1 // pred_region
      _
    $region17: #{_lsq_forward_pertensor.3} parent=1 // pred_fallthru
      _
    // Predicated region
    $region18: #{_lsq_forward_pertensor.3} parent=1 // pred_check
      _
    $region19: #{_lsq_forward_pertensor.3} parent=1 // pred_check_branch
      %45 = sbr.rel (0) target = $region21
    $region20: #{_lsq_forward_pertensor.3} parent=1 // pred_region
      _
    $region21: #{_lsq_forward_pertensor.3} parent=1 // pred_fallthru
      _
    %46 = vsyncpa [#allocation3], 1

// kernel: _lsq_forward_pertensor.2
$region0: #{_lsq_forward_pertensor.2}
  #allocation0 [shape = 'u32[]', space=smem, size = 0x4, offset = 0x4, fixed_abs, tag = 'smem constant byte address 0x4 - core index']
  #allocation1 [shape = 'u32[144,128]{1,0:T(1,128)}', space=vmem, size = 0x12000, scoped, tag = 'internal scratch']
  %s0 = inlined_call_operand.vmem [shape: f32[16,128], index: 0, kind: input, shape index: {}]
  %s1 = inlined_call_operand.vmem [shape: f32[1,128], index: 1, kind: output, shape index: {}]
  %s2 = sld [smem:[#allocation0]]
  $region18: #{_lsq_forward_pertensor.2} parent=0
    _
  %s4 = ssub.s32 1, %s2
  %s5 = scalar_select 0, %s4, %s2
  // Predicated region
  $region2: #{_lsq_forward_pertensor.2} parent=0 // pred_check
    _
  $region3: #{_lsq_forward_pertensor.2} parent=0 // pred_check_branch
    %7 = sbr.rel (0) target = $region5
  $region4: #{_lsq_forward_pertensor.2} parent=0 // pred_region
    _
  $region5: #{_lsq_forward_pertensor.2} parent=0 // pred_fallthru
    _
  %p8 = scmp.eq.s32.totalorder 0, 0
  // Predicated region
  $region6: #{_lsq_forward_pertensor.2} parent=0 // pred_check
    %p9 = pneg %p8
  $region7: #{_lsq_forward_pertensor.2} parent=0 // pred_check_branch
    %11 = sbr.rel (%p9) target = $region9
  $region8: #{_lsq_forward_pertensor.2} parent=0 // pred_region
    %12 = vst [vmem:[%s1] sm:$0x1] 0.0
  $region9: #{_lsq_forward_pertensor.2} parent=0 // pred_fallthru
    _
  %v13 = vld [vmem:[%s0] sm:$0xff]
  %v14 = vld [vmem:[%s0 + $0x8] sm:$0xff]
  %v15 = vand.u32 2147483647, %v13
  %v16 = vand.u32 2147483647, %v14
  %v17 = vld [vmem:[%s1] sm:$0x1]
  %v18 = vadd.f32 %v15, %v16
  %v19 = vrot.slane %v18, 4
  %v20 = vadd.f32 %v18, %v19
  %v21 = vrot.slane %v20, 2
  %v22 = vadd.f32 %v20, %v21
  %v23 = vrot.slane %v22, 1
  %v24 = vadd.f32 %v22, %v23
  %v25 = vadd.f32 %v17, %v24
  %26 = vst [vmem:[%s1] sm:$0x1] %v25
  // Predicated region
  $region10: #{_lsq_forward_pertensor.2} parent=0 // pred_check
    _
  $region11: #{_lsq_forward_pertensor.2} parent=0 // pred_check_branch
    %28 = sbr.rel (0) target = $region13
  $region12: #{_lsq_forward_pertensor.2} parent=0 // pred_region
    _
  $region13: #{_lsq_forward_pertensor.2} parent=0 // pred_fallthru
    _
  // Predicated region
  $region14: #{_lsq_forward_pertensor.2} parent=0 // pred_check
    _
  $region15: #{_lsq_forward_pertensor.2} parent=0 // pred_check_branch
    %30 = sbr.rel (0) target = $region17
  $region16: #{_lsq_forward_pertensor.2} parent=0 // pred_region
    _
  $region17: #{_lsq_forward_pertensor.2} parent=0 // pred_fallthru
    _

</llo_original>
